<compile_context>
chip_gen: v7x
topology: tpu7x:2x2x1
jax: 0.10.0
libtpu: 0.0.40
codegen_flags: <defaults>
</compile_context>

<pallas_src>
import functools

import jax
import jax.numpy as jnp
import numpy as np
from jax.experimental import pallas as pl
from jax.experimental.pallas import tpu as pltpu

LN_EPS = 1e-5   # nn.LayerNorm default
LANE = 128


def _round_up(x, m):
    return (x + m - 1) // m * m


# ----------------------------------------------------------------------------
# Kernel
# ----------------------------------------------------------------------------
def _masked_layernorm(x, gamma, beta, n_real, n_total):
    """LayerNorm over the first `n_real` lanes of x (lanes >= n_real are exact 0).

    Matches nn.LayerNorm (biased variance, eps=1e-5). Each padded lane
    contributes exactly mu^2 to sum((x-mu)^2), so subtract that closed form
    instead of masking. gamma/beta are zero on padded lanes -> output stays 0.
    """
    inv_n = 1.0 / n_real
    mu = jnp.sum(x, axis=-1, keepdims=True) * inv_n
    xc = x - mu
    ss = jnp.sum(xc * xc, axis=-1, keepdims=True)
    var = (ss - (n_total - n_real) * (mu * mu)) * inv_n
    return xc * jax.lax.rsqrt(var + LN_EPS) * gamma + beta


def _critic_kernel(state_ref, act_ref,
                   w1_ref, b1_ref, g1_ref, be1_ref,
                   w2_ref, b2_ref, g2_ref, be2_ref,
                   wq_ref, bq_ref, out_ref, *, h1, h2):
    kp = w1_ref.shape[1]     # padded width of hidden-1 / fc2 contraction
    h2p = w2_ref.shape[1]    # padded width of hidden-2

    # fc1: one lane-dense MXU push (TB, SP) @ (SP, KP). Padded weight columns
    # are zero, so lanes >= h1 of x come out as exact zeros.
    x = jnp.dot(state_ref[...], w1_ref[...], preferred_element_type=jnp.float32)
    x = x + b1_ref[...]
    x = _masked_layernorm(x, g1_ref[...], be1_ref[...], h1, kp)
    x = jnp.maximum(x, 0.0)

    # torch.cat([x, action], 1): the action was pre-shifted into lanes
    # [h1, h1+A) by the wrapper and x is exactly zero there -> a single VPU add.
    fused = x + act_ref[...].astype(jnp.float32)

    # fc2: ONE fused MXU push over the padded K = KP contraction (instead of two
    # separate K=32 / K=8 matmuls).
    y = jnp.dot(fused.astype(w2_ref.dtype), w2_ref[...],
                preferred_element_type=jnp.float32)
    y = y + b2_ref[...]
    y = _masked_layernorm(y, g2_ref[...], be2_ref[...], h2, h2p)
    y = jnp.maximum(y, 0.0)

    # q head: avoid an N=1 MXU matmul -> VPU multiply + XLU lane reduction.
    v = jnp.sum(y * wq_ref[...], axis=-1, keepdims=True) + bq_ref[0, 0]
    out_ref[...] = v.astype(out_ref.dtype)


# ----------------------------------------------------------------------------
# Parameter init (mirrors the torch module) and lane-padded packing
# ----------------------------------------------------------------------------
def init_raw_params(key, state_dims, action_dims, h1, h2):
    """Deterministic init mirroring CriticNetwork.__init__ (fan = weight.size()[0])."""
    ks = jax.random.split(key, 6)
    f1 = 1.0 / np.sqrt(h1)       # fc1.weight.size()[0] == h1
    f2 = 1.0 / np.sqrt(h2)       # fc2.weight.size()[0] == h2
    f3 = 3e-4
    return {
        # weights stored pre-transposed: (in_features, out_features)
        "w1": jax.random.uniform(ks[0], (state_dims, h1), jnp.float32, -f1, f1),
        "b1": jax.random.uniform(ks[1], (h1,), jnp.float32, -f1, f1),
        "g1": jnp.ones((h1,), jnp.float32), "be1": jnp.zeros((h1,), jnp.float32),
        "w2": jax.random.uniform(ks[2], (h1 + action_dims, h2), jnp.float32, -f2, f2),
        "b2": jax.random.uniform(ks[3], (h2,), jnp.float32, -f2, f2),
        "g2": jnp.ones((h2,), jnp.float32), "be2": jnp.zeros((h2,), jnp.float32),
        "wq": jax.random.uniform(ks[4], (h2, 1), jnp.float32, -f3, f3),
        "bq": jax.random.uniform(ks[5], (1,), jnp.float32, -f3 * 0.1, f3 * 0.1),
    }


def pack_params(raw, *, dtype=jnp.float32):
    """Zero-pad features to the 128-lane boundary and fuse the fc2 weight.

    `dtype` controls the MXU operand dtype only (use jnp.bfloat16 on v6e/v7x for
    ~2x MXU rate); LayerNorm/bias/q-head params stay f32.
    """
    S, h1 = raw["w1"].shape
    k2, h2 = raw["w2"].shape
    A = k2 - h1
    SP = _round_up(S, LANE)
    KP = _round_up(h1 + A, LANE)
    H2P = _round_up(h2, LANE)
    f32 = jnp.float32

    w1p = jnp.zeros((SP, KP), dtype).at[:S, :h1].set(raw["w1"].astype(dtype))
    b1p = jnp.zeros((1, KP), f32).at[0, :h1].set(raw["b1"])
    g1p = jnp.zeros((1, KP), f32).at[0, :h1].set(raw["g1"])
    be1p = jnp.zeros((1, KP), f32).at[0, :h1].set(raw["be1"])

    # fused fc2 weight: rows [0,h1) multiply x, rows [h1,h1+A) multiply action.
    w2p = jnp.zeros((KP, H2P), dtype).at[:h1 + A, :h2].set(raw["w2"].astype(dtype))
    b2p = jnp.zeros((1, H2P), f32).at[0, :h2].set(raw["b2"])
    g2p = jnp.zeros((1, H2P), f32).at[0, :h2].set(raw["g2"])
    be2p = jnp.zeros((1, H2P), f32).at[0, :h2].set(raw["be2"])

    wqp = jnp.zeros((1, H2P), f32).at[0, :h2].set(raw["wq"][:, 0])
    bq = raw["bq"].reshape(1, 1).astype(f32)

    return {
        "w1p": w1p, "b1p": b1p, "g1p": g1p, "be1p": be1p,
        "w2p": w2p, "b2p": b2p, "g2p": g2p, "be2p": be2p,
        "wqp": wqp, "bq": bq,
        "state_dims": int(S), "action_dims": int(A), "h1": int(h1), "h2": int(h2),
    }


# ----------------------------------------------------------------------------
# Wrapper
# ----------------------------------------------------------------------------
def critic_forward(state, action, packed, *, block_b=None):
    B, S = state.shape
    A, h1, h2 = packed["action_dims"], packed["h1"], packed["h2"]
    SP, KP = packed["w1p"].shape
    cdt = packed["w1p"].dtype

    # Batch tile: big enough to amortize the ~0.35us/step overhead, small enough
    # for v7x's 64 MiB VMEM (weights here are only ~128 KiB, so 256 is easy).
    if block_b is None:
        block_b = 256 if B >= 256 else _round_up(B, 8)
    TB = _round_up(block_b, 8)
    B_pad = _round_up(B, TB)
    n_tiles = B_pad // TB

    # Layout plumbing (outside the kernel): lane-dense padded state, and the
    # action pre-shifted into lanes [h1, h1+A) so the in-kernel concat is an add.
    state_p = jnp.pad(state.astype(cdt), ((0, B_pad - B), (0, SP - S)))
    act_p = jnp.pad(action.astype(cdt), ((0, B_pad - B), (h1, KP - h1 - A)))

    kernel = functools.partial(_critic_kernel, h1=h1, h2=h2)

    def _full(arr):  # whole array, VMEM-resident across the grid (no re-DMA)
        return pl.BlockSpec(arr.shape, lambda *_: (0,) * arr.ndim)

    grid_spec = pltpu.PrefetchScalarGridSpec(
        num_scalar_prefetch=0,
        grid=(n_tiles,),
        in_specs=[
            pl.BlockSpec((TB, SP), lambda i: (i, 0)),     # state tile
            pl.BlockSpec((TB, KP), lambda i: (i, 0)),     # shifted-action tile
            _full(packed["w1p"]), _full(packed["b1p"]),
            _full(packed["g1p"]), _full(packed["be1p"]),
            _full(packed["w2p"]), _full(packed["b2p"]),
            _full(packed["g2p"]), _full(packed["be2p"]),
            _full(packed["wqp"]),
            pl.BlockSpec(memory_space=pltpu.MemorySpace.SMEM),  # bq scalar
        ],
        out_specs=pl.BlockSpec((TB, 1), lambda i: (i, 0)),
    )

    out = pl.pallas_call(
        kernel,
        out_shape=jax.ShapeDtypeStruct((B_pad, 1), jnp.float32),
        grid_spec=grid_spec,
        compiler_params=pltpu.CompilerParams(
            dimension_semantics=("parallel",)),   # shard batch tiles across TCs
    )(state_p, act_p,
      packed["w1p"], packed["b1p"], packed["g1p"], packed["be1p"],
      packed["w2p"], packed["b2p"], packed["g2p"], packed["be2p"],
      packed["wqp"], packed["bq"])
    return out[:B]


# ----------------------------------------------------------------------------
# Pure-JAX reference (unpadded, mirrors the torch forward exactly)
# ----------------------------------------------------------------------------
def _layernorm_ref(x, gamma, beta):
    mu = jnp.mean(x, axis=-1, keepdims=True)
    xc = x - mu
    var = jnp.mean(xc * xc, axis=-1, keepdims=True)
    return xc * jax.lax.rsqrt(var + LN_EPS) * gamma + beta


def critic_ref(state, action, raw):
    hp = jax.lax.Precision.HIGHEST
    x = jnp.dot(state, raw["w1"], precision=hp) + raw["b1"]
    x = jnp.maximum(_layernorm_ref(x, raw["g1"], raw["be1"]), 0.0)
    xa = jnp.concatenate([x, action], axis=1)
    y = jnp.dot(xa, raw["w2"], precision=hp) + raw["b2"]
    y = jnp.maximum(_layernorm_ref(y, raw["g2"], raw["be2"]), 0.0)
    return jnp.dot(y, raw["wq"], precision=hp) + raw["bq"]


if __name__ == "__main__":
    state_dims, action_dims, h1, h2 = 16, 8, 32, 32
    batch = 32          # small demo; block_b=8 -> a 4-step batch grid

    key = jax.random.PRNGKey(0)
    k_s, k_a, k_p = jax.random.split(key, 3)
    state = jax.random.normal(k_s, (batch, state_dims), jnp.float32)
    action = jax.random.normal(k_a, (batch, action_dims), jnp.float32)

    raw = init_raw_params(k_p, state_dims, action_dims, h1, h2)
    packed = pack_params(raw)   # pass dtype=jnp.bfloat16 on v6e/v7x for 2x MXU rate

    v = critic_forward(state, action, packed, block_b=8)
    v = jax.block_until_ready(v)

    v_ref = critic_ref(state, action, raw)
    assert v.shape == (batch, 1)
    np.testing.assert_allclose(np.asarray(v), np.asarray(v_ref), rtol=1e-4, atol=1e-5)

    print("KERNEL_OK")
</pallas_src>

<mosaic_0001>
module attributes {stable_mosaic.version = 11 : i64} {
  func.func @_critic_kernel(%arg0: i32, %arg1: memref<8x128xf32, #tpu.memory_space<vmem>>, %arg2: memref<8x128xf32, #tpu.memory_space<vmem>>, %arg3: memref<128x128xf32, #tpu.memory_space<vmem>>, %arg4: memref<1x128xf32, #tpu.memory_space<vmem>>, %arg5: memref<1x128xf32, #tpu.memory_space<vmem>>, %arg6: memref<1x128xf32, #tpu.memory_space<vmem>>, %arg7: memref<128x128xf32, #tpu.memory_space<vmem>>, %arg8: memref<1x128xf32, #tpu.memory_space<vmem>>, %arg9: memref<1x128xf32, #tpu.memory_space<vmem>>, %arg10: memref<1x128xf32, #tpu.memory_space<vmem>>, %arg11: memref<1x128xf32, #tpu.memory_space<vmem>>, %arg12: memref<1x1xf32, #tpu.memory_space<smem>>, %arg13: memref<8x1xf32, #tpu.memory_space<vmem>>) attributes {dimension_semantics = [#tpu.dimension_semantics<parallel>], iteration_bounds = array<i64: 4>, scalar_prefetch = 0 : i64, scratch_operands = 0 : i64, tpu.core_type = #tpu.core_type<tc>, window_params = [{transform_indices = @transform_0, window_bounds = array<i64: 8, 128>}, {transform_indices = @transform_1, window_bounds = array<i64: 8, 128>}, {pipeline_mode = #tpu.pipeline_mode<synchronous>, transform_indices = @transform_2, window_bounds = array<i64: 128, 128>}, {pipeline_mode = #tpu.pipeline_mode<synchronous>, transform_indices = @transform_3, window_bounds = array<i64: 1, 128>}, {pipeline_mode = #tpu.pipeline_mode<synchronous>, transform_indices = @transform_4, window_bounds = array<i64: 1, 128>}, {pipeline_mode = #tpu.pipeline_mode<synchronous>, transform_indices = @transform_5, window_bounds = array<i64: 1, 128>}, {pipeline_mode = #tpu.pipeline_mode<synchronous>, transform_indices = @transform_6, window_bounds = array<i64: 128, 128>}, {pipeline_mode = #tpu.pipeline_mode<synchronous>, transform_indices = @transform_7, window_bounds = array<i64: 1, 128>}, {pipeline_mode = #tpu.pipeline_mode<synchronous>, transform_indices = @transform_8, window_bounds = array<i64: 1, 128>}, {pipeline_mode = #tpu.pipeline_mode<synchronous>, transform_indices = @transform_9, window_bounds = array<i64: 1, 128>}, {pipeline_mode = #tpu.pipeline_mode<synchronous>, transform_indices = @transform_10, window_bounds = array<i64: 1, 128>}, {transform_indices = @transform_11, window_bounds = array<i64: 1, 1>}, {transform_indices = @transform_12, window_bounds = array<i64: 8, 1>}]} {
    %c0 = arith.constant 0 : index
    %c0_0 = arith.constant 0 : index
    %0 = vector.load %arg1[%c0, %c0_0] : memref<8x128xf32, #tpu.memory_space<vmem>>, vector<8x128xf32>
    %c0_1 = arith.constant 0 : index
    %c0_2 = arith.constant 0 : index
    %1 = vector.load %arg3[%c0_1, %c0_2] : memref<128x128xf32, #tpu.memory_space<vmem>>, vector<128x128xf32>
    %cst = arith.constant dense<0.000000e+00> : vector<8x128xf32>
    %2 = tpu.matmul %0, %1, %cst {dimension_numbers = #tpu.dot_dimension_numbers<[1], [0], [0], [1], [0, 0, 1, 1], [], []>} : vector<8x128xf32>, vector<128x128xf32>, vector<8x128xf32> -> vector<8x128xf32>
    %c0_3 = arith.constant 0 : index
    %c0_4 = arith.constant 0 : index
    %3 = vector.load %arg4[%c0_3, %c0_4] : memref<1x128xf32, #tpu.memory_space<vmem>>, vector<1x128xf32>
    %4 = vector.broadcast %3 : vector<1x128xf32> to vector<8x128xf32>
    %5 = arith.addf %2, %4 : vector<8x128xf32>
    %c0_5 = arith.constant 0 : index
    %c0_6 = arith.constant 0 : index
    %6 = vector.load %arg5[%c0_5, %c0_6] : memref<1x128xf32, #tpu.memory_space<vmem>>, vector<1x128xf32>
    %c0_7 = arith.constant 0 : index
    %c0_8 = arith.constant 0 : index
    %7 = vector.load %arg6[%c0_7, %c0_8] : memref<1x128xf32, #tpu.memory_space<vmem>>, vector<1x128xf32>
    %cst_9 = arith.constant dense<0.000000e+00> : vector<8xf32>
    %8 = vector.multi_reduction <add>, %5, %cst_9 [1] : vector<8x128xf32> to vector<8xf32>
    %9 = vector.shape_cast %8 : vector<8xf32> to vector<8x1xf32>
    %cst_10 = arith.constant 3.125000e-02 : f32
    %10 = vector.broadcast %cst_10 : f32 to vector<8x1xf32>
    %11 = arith.mulf %9, %10 : vector<8x1xf32>
    %12 = vector.broadcast %11 : vector<8x1xf32> to vector<8x128xf32>
    %13 = arith.subf %5, %12 : vector<8x128xf32>
    %14 = arith.mulf %13, %13 : vector<8x128xf32>
    %cst_11 = arith.constant dense<0.000000e+00> : vector<8xf32>
    %15 = vector.multi_reduction <add>, %14, %cst_11 [1] : vector<8x128xf32> to vector<8xf32>
    %16 = vector.shape_cast %15 : vector<8xf32> to vector<8x1xf32>
    %17 = arith.mulf %11, %11 : vector<8x1xf32>
    %cst_12 = arith.constant 9.600000e+01 : f32
    %18 = vector.broadcast %cst_12 : f32 to vector<8x1xf32>
    %19 = arith.mulf %18, %17 : vector<8x1xf32>
    %20 = arith.subf %16, %19 : vector<8x1xf32>
    %cst_13 = arith.constant 3.125000e-02 : f32
    %21 = vector.broadcast %cst_13 : f32 to vector<8x1xf32>
    %22 = arith.mulf %20, %21 : vector<8x1xf32>
    %cst_14 = arith.constant 9.99999974E-6 : f32
    %23 = vector.broadcast %cst_14 : f32 to vector<8x1xf32>
    %24 = arith.addf %22, %23 : vector<8x1xf32>
    %25 = math.rsqrt %24 : vector<8x1xf32>
    %26 = vector.broadcast %25 : vector<8x1xf32> to vector<8x128xf32>
    %27 = arith.mulf %13, %26 : vector<8x128xf32>
    %28 = vector.broadcast %6 : vector<1x128xf32> to vector<8x128xf32>
    %29 = arith.mulf %27, %28 : vector<8x128xf32>
    %30 = vector.broadcast %7 : vector<1x128xf32> to vector<8x128xf32>
    %31 = arith.addf %29, %30 : vector<8x128xf32>
    %cst_15 = arith.constant 0.000000e+00 : f32
    %32 = vector.broadcast %cst_15 : f32 to vector<8x128xf32>
    %33 = arith.maximumf %31, %32 : vector<8x128xf32>
    %c0_16 = arith.constant 0 : index
    %c0_17 = arith.constant 0 : index
    %34 = vector.load %arg2[%c0_16, %c0_17] : memref<8x128xf32, #tpu.memory_space<vmem>>, vector<8x128xf32>
    %35 = arith.addf %33, %34 : vector<8x128xf32>
    %c0_18 = arith.constant 0 : index
    %c0_19 = arith.constant 0 : index
    %36 = vector.load %arg7[%c0_18, %c0_19] : memref<128x128xf32, #tpu.memory_space<vmem>>, vector<128x128xf32>
    %cst_20 = arith.constant dense<0.000000e+00> : vector<8x128xf32>
    %37 = tpu.matmul %35, %36, %cst_20 {dimension_numbers = #tpu.dot_dimension_numbers<[1], [0], [0], [1], [0, 0, 1, 1], [], []>} : vector<8x128xf32>, vector<128x128xf32>, vector<8x128xf32> -> vector<8x128xf32>
    %c0_21 = arith.constant 0 : index
    %c0_22 = arith.constant 0 : index
    %38 = vector.load %arg8[%c0_21, %c0_22] : memref<1x128xf32, #tpu.memory_space<vmem>>, vector<1x128xf32>
    %39 = vector.broadcast %38 : vector<1x128xf32> to vector<8x128xf32>
    %40 = arith.addf %37, %39 : vector<8x128xf32>
    %c0_23 = arith.constant 0 : index
    %c0_24 = arith.constant 0 : index
    %41 = vector.load %arg9[%c0_23, %c0_24] : memref<1x128xf32, #tpu.memory_space<vmem>>, vector<1x128xf32>
    %c0_25 = arith.constant 0 : index
    %c0_26 = arith.constant 0 : index
    %42 = vector.load %arg10[%c0_25, %c0_26] : memref<1x128xf32, #tpu.memory_space<vmem>>, vector<1x128xf32>
    %cst_27 = arith.constant dense<0.000000e+00> : vector<8xf32>
    %43 = vector.multi_reduction <add>, %40, %cst_27 [1] : vector<8x128xf32> to vector<8xf32>
    %44 = vector.shape_cast %43 : vector<8xf32> to vector<8x1xf32>
    %cst_28 = arith.constant 3.125000e-02 : f32
    %45 = vector.broadcast %cst_28 : f32 to vector<8x1xf32>
    %46 = arith.mulf %44, %45 : vector<8x1xf32>
    %47 = vector.broadcast %46 : vector<8x1xf32> to vector<8x128xf32>
    %48 = arith.subf %40, %47 : vector<8x128xf32>
    %49 = arith.mulf %48, %48 : vector<8x128xf32>
    %cst_29 = arith.constant dense<0.000000e+00> : vector<8xf32>
    %50 = vector.multi_reduction <add>, %49, %cst_29 [1] : vector<8x128xf32> to vector<8xf32>
    %51 = vector.shape_cast %50 : vector<8xf32> to vector<8x1xf32>
    %52 = arith.mulf %46, %46 : vector<8x1xf32>
    %cst_30 = arith.constant 9.600000e+01 : f32
    %53 = vector.broadcast %cst_30 : f32 to vector<8x1xf32>
    %54 = arith.mulf %53, %52 : vector<8x1xf32>
    %55 = arith.subf %51, %54 : vector<8x1xf32>
    %cst_31 = arith.constant 3.125000e-02 : f32
    %56 = vector.broadcast %cst_31 : f32 to vector<8x1xf32>
    %57 = arith.mulf %55, %56 : vector<8x1xf32>
    %cst_32 = arith.constant 9.99999974E-6 : f32
    %58 = vector.broadcast %cst_32 : f32 to vector<8x1xf32>
    %59 = arith.addf %57, %58 : vector<8x1xf32>
    %60 = math.rsqrt %59 : vector<8x1xf32>
    %61 = vector.broadcast %60 : vector<8x1xf32> to vector<8x128xf32>
    %62 = arith.mulf %48, %61 : vector<8x128xf32>
    %63 = vector.broadcast %41 : vector<1x128xf32> to vector<8x128xf32>
    %64 = arith.mulf %62, %63 : vector<8x128xf32>
    %65 = vector.broadcast %42 : vector<1x128xf32> to vector<8x128xf32>
    %66 = arith.addf %64, %65 : vector<8x128xf32>
    %cst_33 = arith.constant 0.000000e+00 : f32
    %67 = vector.broadcast %cst_33 : f32 to vector<8x128xf32>
    %68 = arith.maximumf %66, %67 : vector<8x128xf32>
    %c0_34 = arith.constant 0 : index
    %c0_35 = arith.constant 0 : index
    %69 = vector.load %arg11[%c0_34, %c0_35] : memref<1x128xf32, #tpu.memory_space<vmem>>, vector<1x128xf32>
    %70 = vector.broadcast %69 : vector<1x128xf32> to vector<8x128xf32>
    %71 = arith.mulf %68, %70 : vector<8x128xf32>
    %cst_36 = arith.constant dense<0.000000e+00> : vector<8xf32>
    %72 = vector.multi_reduction <add>, %71, %cst_36 [1] : vector<8x128xf32> to vector<8xf32>
    %73 = vector.shape_cast %72 : vector<8xf32> to vector<8x1xf32>
    %c0_37 = arith.constant 0 : index
    %c0_38 = arith.constant 0 : index
    %74 = memref.load %arg12[%c0_37, %c0_38] : memref<1x1xf32, #tpu.memory_space<smem>>
    %75 = vector.broadcast %74 : f32 to vector<8x1xf32>
    %76 = arith.addf %73, %75 : vector<8x1xf32>
    %c0_39 = arith.constant 0 : index
    %c0_40 = arith.constant 0 : index
    %77 = vector.load %arg13[%c0_39, %c0_40] : memref<8x1xf32, #tpu.memory_space<vmem>>, vector<8x1xf32>
    tpu.vector_store %arg13[%c0_39, %c0_40], %76 {strides = array<i32>} : memref<8x1xf32, #tpu.memory_space<vmem>>, vector<8x1xf32>,
    return
  }
  func.func @transform_0(%arg0: i32) -> (i32, i32) {
    %c0_i32 = arith.constant 0 : i32
    %c0_i32_0 = arith.constant 0 : i32
    return %arg0, %c0_i32 : i32, i32
  }
  func.func @transform_1(%arg0: i32) -> (i32, i32) {
    %c0_i32 = arith.constant 0 : i32
    %c0_i32_0 = arith.constant 0 : i32
    return %arg0, %c0_i32 : i32, i32
  }
  func.func @transform_2(%arg0: i32) -> (i32, i32) {
    %c0_i32 = arith.constant 0 : i32
    %c0_i32_0 = arith.constant 0 : i32
    %c0_i32_1 = arith.constant 0 : i32
    return %c0_i32, %c0_i32_0 : i32, i32
  }
  func.func @transform_3(%arg0: i32) -> (i32, i32) {
    %c0_i32 = arith.constant 0 : i32
    %c0_i32_0 = arith.constant 0 : i32
    %c0_i32_1 = arith.constant 0 : i32
    return %c0_i32, %c0_i32_0 : i32, i32
  }
  func.func @transform_4(%arg0: i32) -> (i32, i32) {
    %c0_i32 = arith.constant 0 : i32
    %c0_i32_0 = arith.constant 0 : i32
    %c0_i32_1 = arith.constant 0 : i32
    return %c0_i32, %c0_i32_0 : i32, i32
  }
  func.func @transform_5(%arg0: i32) -> (i32, i32) {
    %c0_i32 = arith.constant 0 : i32
    %c0_i32_0 = arith.constant 0 : i32
    %c0_i32_1 = arith.constant 0 : i32
    return %c0_i32, %c0_i32_0 : i32, i32
  }
  func.func @transform_6(%arg0: i32) -> (i32, i32) {
    %c0_i32 = arith.constant 0 : i32
    %c0_i32_0 = arith.constant 0 : i32
    %c0_i32_1 = arith.constant 0 : i32
    return %c0_i32, %c0_i32_0 : i32, i32
  }
  func.func @transform_7(%arg0: i32) -> (i32, i32) {
    %c0_i32 = arith.constant 0 : i32
    %c0_i32_0 = arith.constant 0 : i32
    %c0_i32_1 = arith.constant 0 : i32
    return %c0_i32, %c0_i32_0 : i32, i32
  }
  func.func @transform_8(%arg0: i32) -> (i32, i32) {
    %c0_i32 = arith.constant 0 : i32
    %c0_i32_0 = arith.constant 0 : i32
    %c0_i32_1 = arith.constant 0 : i32
    return %c0_i32, %c0_i32_0 : i32, i32
  }
  func.func @transform_9(%arg0: i32) -> (i32, i32) {
    %c0_i32 = arith.constant 0 : i32
    %c0_i32_0 = arith.constant 0 : i32
    %c0_i32_1 = arith.constant 0 : i32
    return %c0_i32, %c0_i32_0 : i32, i32
  }
  func.func @transform_10(%arg0: i32) -> (i32, i32) {
    %c0_i32 = arith.constant 0 : i32
    %c0_i32_0 = arith.constant 0 : i32
    %c0_i32_1 = arith.constant 0 : i32
    return %c0_i32, %c0_i32_0 : i32, i32
  }
  func.func @transform_11(%arg0: i32) -> (i32, i32) {
    %c0_i32 = arith.constant 0 : i32
    %c0_i32_0 = arith.constant 0 : i32
    %c0_i32_1 = arith.constant 0 : i32
    return %c0_i32, %c0_i32_0 : i32, i32
  }
  func.func @transform_12(%arg0: i32) -> (i32, i32) {
    %c0_i32 = arith.constant 0 : i32
    %c0_i32_0 = arith.constant 0 : i32
    return %arg0, %c0_i32 : i32, i32
  }
}

</mosaic_0001>

<llo_original>
// kernel: tpu_custom_call.1
$region0: #{tpu_custom_call.1}
  #allocation0 [shape = 'u32[]', space=smem, size = 0x4, offset = 0x4, fixed_abs, tag = 'smem constant byte address 0x4 - core index']
  #allocation1 [shape = 'u32[144,128]{1,0:T(1,128)}', space=vmem, size = 0x12000, scoped, tag = 'internal scratch']
  #allocation2 [shape = 'f32[1,1]{1,0:T(1,128)S(6)}', space=smem, size = 0x200, scoped, tag = 'scoped memory for tpu_custom_call.1']
  %s0 = inlined_call_operand.hbm [shape: f32[32,128], index: 0, kind: input, shape index: {}]
  %s1 = inlined_call_operand.hbm [shape: f32[32,128], index: 1, kind: input, shape index: {}]
  %s2 = inlined_call_operand.hbm [shape: f32[128,128], index: 2, kind: input, shape index: {}]
  %s3 = inlined_call_operand.vmem [shape: f32[1,128], index: 3, kind: input, shape index: {}]
  %s4 = inlined_call_operand.vmem [shape: f32[1,128], index: 4, kind: input, shape index: {}]
  %s5 = inlined_call_operand.vmem [shape: f32[1,128], index: 5, kind: input, shape index: {}]
  %s6 = inlined_call_operand.hbm [shape: f32[128,128], index: 6, kind: input, shape index: {}]
  %s7 = inlined_call_operand.vmem [shape: f32[1,128], index: 7, kind: input, shape index: {}]
  %s8 = inlined_call_operand.vmem [shape: f32[1,128], index: 8, kind: input, shape index: {}]
  %s9 = inlined_call_operand.vmem [shape: f32[1,128], index: 9, kind: input, shape index: {}]
  %s10 = inlined_call_operand.vmem [shape: f32[1,128], index: 10, kind: input, shape index: {}]
  %s11 = inlined_call_operand.<no memory space> [shape: f32[1,1], index: 11, kind: input, shape index: {}]
  %s12 = inlined_call_operand.vmem [shape: f32[32,1], index: 12, kind: output, shape index: {}]
  %s13 = sld [smem:[#allocation0]]
  $region97: #{tpu_custom_call.1} parent=0
    _
  %s15 = ssub.s32 1, %s13
  %s16 = scalar_select 0, %s15, %s13
  %17 = sst [smem:[#allocation2]] %s11
  $region1: #{tpu_custom_call.1} parent=0
    #allocation3 [shape = 'u8[8192]{0}', space=vmem, size = 0x2000, scoped, tag = 'input window, operand 0']
    #allocation4 [shape = 's32[2]{0}', space=sflag, size = 0x8, scoped, tag = 'scoped memory for tpu_custom_call.1']
    #allocation5 [shape = 'u8[8192]{0}', space=vmem, size = 0x2000, scoped, tag = 'input window, operand 1']
    #allocation6 [shape = 's32[2]{0}', space=sflag, size = 0x8, scoped, tag = 'scoped memory for tpu_custom_call.1']
    #allocation7 [shape = 'u8[65536]{0}', space=vmem, size = 0x10000, scoped, tag = 'input window, operand 2, single buffered']
    #allocation8 [shape = 'u8[65536]{0}', space=vmem, size = 0x10000, scoped, tag = 'input window, operand 6, single buffered']
    #allocation9 [shape = 's32[1]{0}', space=sflag, size = 0x4, scoped, tag = 'scoped memory for tpu_custom_call.1']
    %18 = vsyncpa [#allocation4], 0
    %s19 = scalar_lea.sflag [#allocation4], 1
    %20 = vsyncpa %s19, 0
    %21 = vsyncpa [#allocation6], 0
    %s22 = scalar_lea.sflag [#allocation6], 1
    %23 = vsyncpa %s22, 0
    %24 = vsyncpa [#allocation9], 0
    loop: start=0, step=1, limit=6
    $region2: #{tpu_custom_call.1} parent=1 // loop_pre_header
      _
    $region3: #{tpu_custom_call.1} parent=1 // loop_header
      %s26 = sphi 0, %s30
      %p27 = scmp.ge.s32.totalorder %s26, 6
      %s36 = sphi 0, %s38
      %s39 = sphi 0, %s36
      %s40 = sphi 0, %s39
      %s56 = sphi 0, %s40
      %s62 = sphi 0, %s64
      %s65 = sphi 0, %s62
      %s66 = sphi 0, %s65
      %s82 = sphi 0, %s66
      %s86 = sphi 0, %s86
      %s88 = sphi 0, %s86
      %s89 = sphi 0, %s88
      %s103 = sphi 0, %s89
      %s107 = sphi 0, %s107
      %s109 = sphi 0, %s107
      %s110 = sphi 0, %s109
      %s124 = sphi 0, %s110
      %s128 = sphi 0, %s128
      %s130 = sphi 0, %s128
      %s131 = sphi 0, %s130
      %s145 = sphi 0, %s131
      %s149 = sphi 0, %s149
      %s151 = sphi 0, %s149
      %s152 = sphi 0, %s151
      %s166 = sphi 0, %s152
      %s170 = sphi 0, %s170
      %s172 = sphi 0, %s170
      %s173 = sphi 0, %s172
      %s187 = sphi 0, %s173
      %s191 = sphi 0, %s191
      %s193 = sphi 0, %s191
      %s194 = sphi 0, %s193
      %s208 = sphi 0, %s194
      %s212 = sphi 0, %s212
      %s214 = sphi 0, %s212
      %s215 = sphi 0, %s214
      %s229 = sphi 0, %s215
      %s233 = sphi 0, %s233
      %s235 = sphi 0, %s233
      %s236 = sphi 0, %s235
      %s250 = sphi 0, %s236
      %s254 = sphi 0, %s254
      %s256 = sphi 0, %s254
      %s257 = sphi 0, %s256
      %s271 = sphi 0, %s257
      %s275 = sphi 0, %s275
      %s277 = sphi 0, %s275
      %s278 = sphi 0, %s277
      %s292 = sphi 0, %s278
      %s298 = sphi 0, %s300
      %s301 = sphi 0, %s298
      %s302 = sphi 0, %s301
      %s318 = sphi 0, %s302
    $region4: #{tpu_custom_call.1} parent=1 // loop_header_branch
      %29 = sbr.rel (%p27) target = $region8
    $region5: #{tpu_custom_call.1} parent=1 // loop_body
      %s31 = ssub.s32 %s26, 1
      %s32 = ssub.s32 %s26, 2
      %s33 = sadd.s32 %s26, 1
      %s34 = ssub.s32 %s26, %s33
      %p35 = scmp.eq.s32.totalorder %s34, 0
      %s37 = sadd.s32 %s36, 1
      %s38 = scalar_select %p35, %s36, %s37
      %p41 = pneg %p35
      %p42 = scmp.eq.s32.totalorder %s26, 3
      %p43 = por %p41, %p42
      %p44 = scmp.ne.s32.totalorder %s36, %s39
      %p45 = scmp.eq.s32.totalorder %s26, 0
      %p46 = por %p44, %p45
      %p47 = scmp.ne.s32.totalorder %s36, %s39
      %p48 = scmp.eq.s32.totalorder %s31, 3
      %p49 = por %p47, %p48
      %p50 = scmp.ne.s32.totalorder %s39, %s40
      %p51 = scmp.eq.s32.totalorder %s31, 0
      %p52 = por %p50, %p51
      %p53 = scmp.ne.s32.totalorder %s39, %s40
      %p54 = scmp.eq.s32.totalorder %s32, 3
      %p55 = por %p53, %p54
      %p57 = scmp.ne.s32.totalorder %s40, %s56
      %p58 = scmp.eq.s32.totalorder %s32, 0
      %p59 = por %p57, %p58
      %s60 = ssub.s32 %s26, %s33
      %p61 = scmp.eq.s32.totalorder %s60, 0
      %s63 = sadd.s32 %s62, 1
      %s64 = scalar_select %p61, %s62, %s63
      %p67 = pneg %p61
      %p68 = scmp.eq.s32.totalorder %s26, 3
      %p69 = por %p67, %p68
      %p70 = scmp.ne.s32.totalorder %s62, %s65
      %p71 = scmp.eq.s32.totalorder %s26, 0
      %p72 = por %p70, %p71
      %p73 = scmp.ne.s32.totalorder %s62, %s65
      %p74 = scmp.eq.s32.totalorder %s31, 3
      %p75 = por %p73, %p74
      %p76 = scmp.ne.s32.totalorder %s65, %s66
      %p77 = scmp.eq.s32.totalorder %s31, 0
      %p78 = por %p76, %p77
      %p79 = scmp.ne.s32.totalorder %s65, %s66
      %p80 = scmp.eq.s32.totalorder %s32, 3
      %p81 = por %p79, %p80
      %p83 = scmp.ne.s32.totalorder %s66, %s82
      %p84 = scmp.eq.s32.totalorder %s32, 0
      %p85 = por %p83, %p84
      %s87 = sadd.s32 %s86, 1
      %p90 = scmp.eq.s32.totalorder %s26, 3
      %p91 = scmp.ne.s32.totalorder %s86, %s88
      %p92 = scmp.eq.s32.totalorder %s26, 0
      %p93 = por %p91, %p92
      %p94 = scmp.ne.s32.totalorder %s86, %s88
      %p95 = scmp.eq.s32.totalorder %s31, 3
      %p96 = por %p94, %p95
      %p97 = scmp.ne.s32.totalorder %s88, %s89
      %p98 = scmp.eq.s32.totalorder %s31, 0
      %p99 = por %p97, %p98
      %p100 = scmp.ne.s32.totalorder %s88, %s89
      %p101 = scmp.eq.s32.totalorder %s32, 3
      %p102 = por %p100, %p101
      %p104 = scmp.ne.s32.totalorder %s89, %s103
      %p105 = scmp.eq.s32.totalorder %s32, 0
      %p106 = por %p104, %p105
      %s108 = sadd.s32 %s107, 1
      %p111 = scmp.eq.s32.totalorder %s26, 3
      %p112 = scmp.ne.s32.totalorder %s107, %s109
      %p113 = scmp.eq.s32.totalorder %s26, 0
      %p114 = por %p112, %p113
      %p115 = scmp.ne.s32.totalorder %s107, %s109
      %p116 = scmp.eq.s32.totalorder %s31, 3
      %p117 = por %p115, %p116
      %p118 = scmp.ne.s32.totalorder %s109, %s110
      %p119 = scmp.eq.s32.totalorder %s31, 0
      %p120 = por %p118, %p119
      %p121 = scmp.ne.s32.totalorder %s109, %s110
      %p122 = scmp.eq.s32.totalorder %s32, 3
      %p123 = por %p121, %p122
      %p125 = scmp.ne.s32.totalorder %s110, %s124
      %p126 = scmp.eq.s32.totalorder %s32, 0
      %p127 = por %p125, %p126
      %s129 = sadd.s32 %s128, 1
      %p132 = scmp.eq.s32.totalorder %s26, 3
      %p133 = scmp.ne.s32.totalorder %s128, %s130
      %p134 = scmp.eq.s32.totalorder %s26, 0
      %p135 = por %p133, %p134
      %p136 = scmp.ne.s32.totalorder %s128, %s130
      %p137 = scmp.eq.s32.totalorder %s31, 3
      %p138 = por %p136, %p137
      %p139 = scmp.ne.s32.totalorder %s130, %s131
      %p140 = scmp.eq.s32.totalorder %s31, 0
      %p141 = por %p139, %p140
      %p142 = scmp.ne.s32.totalorder %s130, %s131
      %p143 = scmp.eq.s32.totalorder %s32, 3
      %p144 = por %p142, %p143
      %p146 = scmp.ne.s32.totalorder %s131, %s145
      %p147 = scmp.eq.s32.totalorder %s32, 0
      %p148 = por %p146, %p147
      %s150 = sadd.s32 %s149, 1
      %p153 = scmp.eq.s32.totalorder %s26, 3
      %p154 = scmp.ne.s32.totalorder %s149, %s151
      %p155 = scmp.eq.s32.totalorder %s26, 0
      %p156 = por %p154, %p155
      %p157 = scmp.ne.s32.totalorder %s149, %s151
      %p158 = scmp.eq.s32.totalorder %s31, 3
      %p159 = por %p157, %p158
      %p160 = scmp.ne.s32.totalorder %s151, %s152
      %p161 = scmp.eq.s32.totalorder %s31, 0
      %p162 = por %p160, %p161
      %p163 = scmp.ne.s32.totalorder %s151, %s152
      %p164 = scmp.eq.s32.totalorder %s32, 3
      %p165 = por %p163, %p164
      %p167 = scmp.ne.s32.totalorder %s152, %s166
      %p168 = scmp.eq.s32.totalorder %s32, 0
      %p169 = por %p167, %p168
      %s171 = sadd.s32 %s170, 1
      %p174 = scmp.eq.s32.totalorder %s26, 3
      %p175 = scmp.ne.s32.totalorder %s170, %s172
      %p176 = scmp.eq.s32.totalorder %s26, 0
      %p177 = por %p175, %p176
      %p178 = scmp.ne.s32.totalorder %s170, %s172
      %p179 = scmp.eq.s32.totalorder %s31, 3
      %p180 = por %p178, %p179
      %p181 = scmp.ne.s32.totalorder %s172, %s173
      %p182 = scmp.eq.s32.totalorder %s31, 0
      %p183 = por %p181, %p182
      %p184 = scmp.ne.s32.totalorder %s172, %s173
      %p185 = scmp.eq.s32.totalorder %s32, 3
      %p186 = por %p184, %p185
      %p188 = scmp.ne.s32.totalorder %s173, %s187
      %p189 = scmp.eq.s32.totalorder %s32, 0
      %p190 = por %p188, %p189
      %s192 = sadd.s32 %s191, 1
      %p195 = scmp.eq.s32.totalorder %s26, 3
      %p196 = scmp.ne.s32.totalorder %s191, %s193
      %p197 = scmp.eq.s32.totalorder %s26, 0
      %p198 = por %p196, %p197
      %p199 = scmp.ne.s32.totalorder %s191, %s193
      %p200 = scmp.eq.s32.totalorder %s31, 3
      %p201 = por %p199, %p200
      %p202 = scmp.ne.s32.totalorder %s193, %s194
      %p203 = scmp.eq.s32.totalorder %s31, 0
      %p204 = por %p202, %p203
      %p205 = scmp.ne.s32.totalorder %s193, %s194
      %p206 = scmp.eq.s32.totalorder %s32, 3
      %p207 = por %p205, %p206
      %p209 = scmp.ne.s32.totalorder %s194, %s208
      %p210 = scmp.eq.s32.totalorder %s32, 0
      %p211 = por %p209, %p210
      %s213 = sadd.s32 %s212, 1
      %p216 = scmp.eq.s32.totalorder %s26, 3
      %p217 = scmp.ne.s32.totalorder %s212, %s214
      %p218 = scmp.eq.s32.totalorder %s26, 0
      %p219 = por %p217, %p218
      %p220 = scmp.ne.s32.totalorder %s212, %s214
      %p221 = scmp.eq.s32.totalorder %s31, 3
      %p222 = por %p220, %p221
      %p223 = scmp.ne.s32.totalorder %s214, %s215
      %p224 = scmp.eq.s32.totalorder %s31, 0
      %p225 = por %p223, %p224
      %p226 = scmp.ne.s32.totalorder %s214, %s215
      %p227 = scmp.eq.s32.totalorder %s32, 3
      %p228 = por %p226, %p227
      %p230 = scmp.ne.s32.totalorder %s215, %s229
      %p231 = scmp.eq.s32.totalorder %s32, 0
      %p232 = por %p230, %p231
      %s234 = sadd.s32 %s233, 1
      %p237 = scmp.eq.s32.totalorder %s26, 3
      %p238 = scmp.ne.s32.totalorder %s233, %s235
      %p239 = scmp.eq.s32.totalorder %s26, 0
      %p240 = por %p238, %p239
      %p241 = scmp.ne.s32.totalorder %s233, %s235
      %p242 = scmp.eq.s32.totalorder %s31, 3
      %p243 = por %p241, %p242
      %p244 = scmp.ne.s32.totalorder %s235, %s236
      %p245 = scmp.eq.s32.totalorder %s31, 0
      %p246 = por %p244, %p245
      %p247 = scmp.ne.s32.totalorder %s235, %s236
      %p248 = scmp.eq.s32.totalorder %s32, 3
      %p249 = por %p247, %p248
      %p251 = scmp.ne.s32.totalorder %s236, %s250
      %p252 = scmp.eq.s32.totalorder %s32, 0
      %p253 = por %p251, %p252
      %s255 = sadd.s32 %s254, 1
      %p258 = scmp.eq.s32.totalorder %s26, 3
      %p259 = scmp.ne.s32.totalorder %s254, %s256
      %p260 = scmp.eq.s32.totalorder %s26, 0
      %p261 = por %p259, %p260
      %p262 = scmp.ne.s32.totalorder %s254, %s256
      %p263 = scmp.eq.s32.totalorder %s31, 3
      %p264 = por %p262, %p263
      %p265 = scmp.ne.s32.totalorder %s256, %s257
      %p266 = scmp.eq.s32.totalorder %s31, 0
      %p267 = por %p265, %p266
      %p268 = scmp.ne.s32.totalorder %s256, %s257
      %p269 = scmp.eq.s32.totalorder %s32, 3
      %p270 = por %p268, %p269
      %p272 = scmp.ne.s32.totalorder %s257, %s271
      %p273 = scmp.eq.s32.totalorder %s32, 0
      %p274 = por %p272, %p273
      %s276 = sadd.s32 %s275, 1
      %p279 = scmp.eq.s32.totalorder %s26, 3
      %p280 = scmp.ne.s32.totalorder %s275, %s277
      %p281 = scmp.eq.s32.totalorder %s26, 0
      %p282 = por %p280, %p281
      %p283 = scmp.ne.s32.totalorder %s275, %s277
      %p284 = scmp.eq.s32.totalorder %s31, 3
      %p285 = por %p283, %p284
      %p286 = scmp.ne.s32.totalorder %s277, %s278
      %p287 = scmp.eq.s32.totalorder %s31, 0
      %p288 = por %p286, %p287
      %p289 = scmp.ne.s32.totalorder %s277, %s278
      %p290 = scmp.eq.s32.totalorder %s32, 3
      %p291 = por %p289, %p290
      %p293 = scmp.ne.s32.totalorder %s278, %s292
      %p294 = scmp.eq.s32.totalorder %s32, 0
      %p295 = por %p293, %p294
      %s296 = ssub.s32 %s26, %s33
      %p297 = scmp.eq.s32.totalorder %s296, 0
      %s299 = sadd.s32 %s298, 1
      %s300 = scalar_select %p297, %s298, %s299
      %p303 = pneg %p297
      %p304 = scmp.eq.s32.totalorder %s26, 3
      %p305 = por %p303, %p304
      %p306 = scmp.ne.s32.totalorder %s298, %s301
      %p307 = scmp.eq.s32.totalorder %s26, 0
      %p308 = por %p306, %p307
      %p309 = scmp.ne.s32.totalorder %s298, %s301
      %p310 = scmp.eq.s32.totalorder %s31, 3
      %p311 = por %p309, %p310
      %p312 = scmp.ne.s32.totalorder %s301, %s302
      %p313 = scmp.eq.s32.totalorder %s31, 0
      %p314 = por %p312, %p313
      %p315 = scmp.ne.s32.totalorder %s301, %s302
      %p316 = scmp.eq.s32.totalorder %s32, 3
      %p317 = por %p315, %p316
      %p319 = scmp.ne.s32.totalorder %s302, %s318
      %p320 = scmp.eq.s32.totalorder %s32, 0
      %p321 = por %p319, %p320
      %p322 = scmp.le.s32.totalorder 1, %s26
      %p323 = scmp.lt.s32.totalorder %s26, 5
      %p324 = pnand %p322, %p323
      %p325 = pneg %p324
      // Predicated region
      $region9: #{tpu_custom_call.1} parent=5 // pred_check
        _
      $region10: #{tpu_custom_call.1} parent=5 // pred_check_branch
        %327 = sbr.rel (%p324) target = $region12
      $region11: #{tpu_custom_call.1} parent=5 // pred_region
        %s328 = ssub.s32 %s26, 1
        // Predicated region
        $region13: #{tpu_custom_call.1} parent=11 // pred_check
          %p329 = pneg %p99
        $region14: #{tpu_custom_call.1} parent=11 // pred_check_branch
          %331 = sbr.rel (%p329) target = $region16
        $region15: #{tpu_custom_call.1} parent=11 // pred_region
          %s333 = ssub.s32 2048, 2048
          %334 = vsyncadd [#allocation6], %s333
          %s335 = sshll.u32 [#allocation7], 4
          %s336 = int_to_ptr.vmem [resolvable:$true] %s335
          %341 = dma.hbm_to_vmem [thread:$0]  %s2, 2048, %s336, [#allocation6], 128, 128, 8
        $region16: #{tpu_custom_call.1} parent=11 // pred_fallthru
          _
        // Predicated region
        $region17: #{tpu_custom_call.1} parent=11 // pred_check
          %p342 = pneg %p120
        $region18: #{tpu_custom_call.1} parent=11 // pred_check_branch
          %344 = sbr.rel (%p342) target = $region20
        $region19: #{tpu_custom_call.1} parent=11 // pred_region
          _
        $region20: #{tpu_custom_call.1} parent=11 // pred_fallthru
          _
        // Predicated region
        $region21: #{tpu_custom_call.1} parent=11 // pred_check
          %p345 = pneg %p141
        $region22: #{tpu_custom_call.1} parent=11 // pred_check_branch
          %347 = sbr.rel (%p345) target = $region24
        $region23: #{tpu_custom_call.1} parent=11 // pred_region
          _
        $region24: #{tpu_custom_call.1} parent=11 // pred_fallthru
          _
        // Predicated region
        $region25: #{tpu_custom_call.1} parent=11 // pred_check
          %p348 = pneg %p162
        $region26: #{tpu_custom_call.1} parent=11 // pred_check_branch
          %350 = sbr.rel (%p348) target = $region28
        $region27: #{tpu_custom_call.1} parent=11 // pred_region
          _
        $region28: #{tpu_custom_call.1} parent=11 // pred_fallthru
          _
        // Predicated region
        $region29: #{tpu_custom_call.1} parent=11 // pred_check
          %p351 = pneg %p183
        $region30: #{tpu_custom_call.1} parent=11 // pred_check_branch
          %353 = sbr.rel (%p351) target = $region32
        $region31: #{tpu_custom_call.1} parent=11 // pred_region
          %s355 = ssub.s32 2048, 2048
          %356 = vsyncadd [#allocation9], %s355
          %s357 = sshll.u32 [#allocation8], 4
          %s358 = int_to_ptr.vmem [resolvable:$true] %s357
          %363 = dma.hbm_to_vmem [thread:$0]  %s6, 2048, %s358, [#allocation9], 128, 128, 8
        $region32: #{tpu_custom_call.1} parent=11 // pred_fallthru
          _
        // Predicated region
        $region33: #{tpu_custom_call.1} parent=11 // pred_check
          %p364 = pneg %p204
        $region34: #{tpu_custom_call.1} parent=11 // pred_check_branch
          %366 = sbr.rel (%p364) target = $region36
        $region35: #{tpu_custom_call.1} parent=11 // pred_region
          _
        $region36: #{tpu_custom_call.1} parent=11 // pred_fallthru
          _
        // Predicated region
        $region37: #{tpu_custom_call.1} parent=11 // pred_check
          %p367 = pneg %p225
        $region38: #{tpu_custom_call.1} parent=11 // pred_check_branch
          %369 = sbr.rel (%p367) target = $region40
        $region39: #{tpu_custom_call.1} parent=11 // pred_region
          _
        $region40: #{tpu_custom_call.1} parent=11 // pred_fallthru
          _
        // Predicated region
        $region41: #{tpu_custom_call.1} parent=11 // pred_check
          %p370 = pneg %p246
        $region42: #{tpu_custom_call.1} parent=11 // pred_check_branch
          %372 = sbr.rel (%p370) target = $region44
        $region43: #{tpu_custom_call.1} parent=11 // pred_region
          _
        $region44: #{tpu_custom_call.1} parent=11 // pred_fallthru
          _
        // Predicated region
        $region45: #{tpu_custom_call.1} parent=11 // pred_check
          %p373 = pneg %p267
        $region46: #{tpu_custom_call.1} parent=11 // pred_check_branch
          %375 = sbr.rel (%p373) target = $region48
        $region47: #{tpu_custom_call.1} parent=11 // pred_region
          _
        $region48: #{tpu_custom_call.1} parent=11 // pred_fallthru
          _
        // Predicated region
        $region49: #{tpu_custom_call.1} parent=11 // pred_check
          %p376 = pneg %p288
        $region50: #{tpu_custom_call.1} parent=11 // pred_check_branch
          %378 = sbr.rel (%p376) target = $region52
        $region51: #{tpu_custom_call.1} parent=11 // pred_region
          _
        $region52: #{tpu_custom_call.1} parent=11 // pred_fallthru
          _
      $region12: #{tpu_custom_call.1} parent=5 // pred_fallthru
        _
      %p379 = scmp.lt.s32.totalorder %s26, 4
      // Predicated region
      $region53: #{tpu_custom_call.1} parent=5 // pred_check
        %p380 = pneg %p379
      $region54: #{tpu_custom_call.1} parent=5 // pred_check_branch
        %382 = sbr.rel (%p380) target = $region56
      $region55: #{tpu_custom_call.1} parent=5 // pred_region
        // Predicated region
        $region57: #{tpu_custom_call.1} parent=55 // pred_check
          %p383 = pneg %p46
        $region58: #{tpu_custom_call.1} parent=55 // pred_check_branch
          %385 = sbr.rel (%p383) target = $region60
        $region59: #{tpu_custom_call.1} parent=55 // pred_region
          %s386 = sand.u32 %s36, 1
          %s387 = scalar_lea.sflag [#allocation4], %s386
          %s388 = sand.u32 %s36, 1
          %s389 = smul.addr %s388, 8
          %s390 = scalar_lea.vmem [#allocation3], %s389
          %s392 = ssub.s32 128, 128
          %393 = vsyncadd %s387, %s392
          %s394 = smul.addr %s26, 128
          %s395 = scalar_lea.hbm %s0, %s394
          %s397 = sshll.u32 %s390, 4
          %s398 = int_to_ptr.vmem [resolvable:$true] %s397
          %400 = dma.hbm_to_vmem [thread:$0]  %s395, 128, %s398, %s387
        $region60: #{tpu_custom_call.1} parent=55 // pred_fallthru
          _
        // Predicated region
        $region61: #{tpu_custom_call.1} parent=55 // pred_check
          %p401 = pneg %p72
        $region62: #{tpu_custom_call.1} parent=55 // pred_check_branch
          %403 = sbr.rel (%p401) target = $region64
        $region63: #{tpu_custom_call.1} parent=55 // pred_region
          %s404 = sand.u32 %s26, 1
          %s405 = scalar_lea.sflag [#allocation6], %s404
          %s406 = sand.u32 %s62, 1
          %s407 = smul.addr %s406, 8
          %s408 = scalar_lea.vmem [#allocation5], %s407
          %s410 = ssub.s32 128, 128
          %411 = vsyncadd %s405, %s410
          %s412 = smul.addr %s26, 128
          %s413 = scalar_lea.hbm %s1, %s412
          %s415 = sshll.u32 %s408, 4
          %s416 = int_to_ptr.vmem [resolvable:$true] %s415
          %418 = dma.hbm_to_vmem [thread:$0]  %s413, 128, %s416, %s405
        $region64: #{tpu_custom_call.1} parent=55 // pred_fallthru
          _
      $region56: #{tpu_custom_call.1} parent=5 // pred_fallthru
        _
      %p419 = scmp.le.s32.totalorder 1, %s26
      %p420 = scmp.lt.s32.totalorder %s26, 5
      %p421 = pnand %p419, %p420
      %p422 = pneg %p421
      // Predicated region
      $region65: #{tpu_custom_call.1} parent=5 // pred_check
        _
      $region66: #{tpu_custom_call.1} parent=5 // pred_check_branch
        %424 = sbr.rel (%p421) target = $region68
      $region67: #{tpu_custom_call.1} parent=5 // pred_region
        %s425 = ssub.s32 %s26, 1
        %s426 = sand.u32 %s39, 1
        %s427 = scalar_lea.sflag [#allocation4], %s426
        %s428 = sand.u32 %s39, 1
        %s429 = smul.addr %s428, 8
        %s430 = scalar_lea.vmem [#allocation3], %s429
        // Predicated region
        $region69: #{tpu_custom_call.1} parent=67 // pred_check
          %p431 = pneg %p52
        $region70: #{tpu_custom_call.1} parent=67 // pred_check_branch
          %433 = sbr.rel (%p431) target = $region72
        $region71: #{tpu_custom_call.1} parent=67 // pred_region
          %434 = dma.done %s427, 128
        $region72: #{tpu_custom_call.1} parent=67 // pred_fallthru
          _
        %s435 = sand.u32 %s31, 1
        %s436 = scalar_lea.sflag [#allocation6], %s435
        %s437 = sand.u32 %s65, 1
        %s438 = smul.addr %s437, 8
        %s439 = scalar_lea.vmem [#allocation5], %s438
        // Predicated region
        $region73: #{tpu_custom_call.1} parent=67 // pred_check
          %p440 = pneg %p78
        $region74: #{tpu_custom_call.1} parent=67 // pred_check_branch
          %442 = sbr.rel (%p440) target = $region76
        $region75: #{tpu_custom_call.1} parent=67 // pred_region
          %443 = dma.done %s436, 128
        $region76: #{tpu_custom_call.1} parent=67 // pred_fallthru
          _
        // Predicated region
        $region77: #{tpu_custom_call.1} parent=67 // pred_check
          %p444 = pneg %p99
        $region78: #{tpu_custom_call.1} parent=67 // pred_check_branch
          %446 = sbr.rel (%p444) target = $region80
        $region79: #{tpu_custom_call.1} parent=67 // pred_region
          %447 = dma.done [#allocation6], 2048
        $region80: #{tpu_custom_call.1} parent=67 // pred_fallthru
          _
        // Predicated region
        $region81: #{tpu_custom_call.1} parent=67 // pred_check
          %p448 = pneg %p183
        $region82: #{tpu_custom_call.1} parent=67 // pred_check_branch
          %450 = sbr.rel (%p448) target = $region84
        $region83: #{tpu_custom_call.1} parent=67 // pred_region
          %451 = dma.done [#allocation9], 2048
        $region84: #{tpu_custom_call.1} parent=67 // pred_fallthru
          _
        %s452 = sand.u32 %s39, 1
        %s453 = scalar_lea.sflag [#allocation4], %s452
        %s454 = sand.u32 %s39, 1
        %s455 = smul.addr %s454, 8
        %s456 = scalar_lea.vmem [#allocation3], %s455
        %p457 = pneg %p52
        %p458 = pneg %p49
        %s459 = sand.u32 %s31, 1
        %s460 = scalar_lea.sflag [#allocation6], %s459
        %s461 = sand.u32 %s65, 1
        %s462 = smul.addr %s461, 8
        %s463 = scalar_lea.vmem [#allocation5], %s462
        %p464 = pneg %p78
        %p465 = pneg %p75
        %p466 = pneg %p99
        %p467 = pneg %p96
        %p468 = pneg %p120
        %p469 = pneg %p117
        %p470 = pneg %p141
        %p471 = pneg %p138
        %p472 = pneg %p162
        %p473 = pneg %p159
        %p474 = pneg %p183
        %p475 = pneg %p180
        %p476 = pneg %p204
        %p477 = pneg %p201
        %p478 = pneg %p225
        %p479 = pneg %p222
        %p480 = pneg %p246
        %p481 = pneg %p243
        %p482 = pneg %p267
        %p483 = pneg %p264
        %p484 = pneg %p288
        %p485 = pneg %p285
        %p486 = pneg %p314
        %p487 = pneg %p311
        %p488 = scmp.lt.s32.totalorder %s31, 3
        %s489 = scalar_select %p488, %s31, 3
        %s490 = smul.addr %s489, 8
        %s491 = scalar_lea.vmem %s12, %s490
        %p492 = scmp.lt.s32.totalorder %s31, 3
        %s493 = scalar_select %p492, %s31, 3
        %s494 = smul.addr %s493, 8
        %s495 = scalar_lea.vmem %s12, %s494
        %v496 = vld [vmem:[%s430] sm:$0xff]
        %v497 = vld [vmem:[#allocation7] sm:$0xff]
        %v498 = vld [vmem:[#allocation7 + $0x8] sm:$0xff]
        %v499 = vld [vmem:[#allocation7 + $0x10] sm:$0xff]
        %v500 = vld [vmem:[#allocation7 + $0x18] sm:$0xff]
        %v501 = vld [vmem:[#allocation7 + $0x20] sm:$0xff]
        %v502 = vld [vmem:[#allocation7 + $0x28] sm:$0xff]
        %v503 = vld [vmem:[#allocation7 + $0x30] sm:$0xff]
        %v504 = vld [vmem:[#allocation7 + $0x38] sm:$0xff]
        %v505 = vld [vmem:[#allocation7 + $0x40] sm:$0xff]
        %v506 = vld [vmem:[#allocation7 + $0x48] sm:$0xff]
        %v507 = vld [vmem:[#allocation7 + $0x50] sm:$0xff]
        %v508 = vld [vmem:[#allocation7 + $0x58] sm:$0xff]
        %v509 = vld [vmem:[#allocation7 + $0x60] sm:$0xff]
        %v510 = vld [vmem:[#allocation7 + $0x68] sm:$0xff]
        %v511 = vld [vmem:[#allocation7 + $0x70] sm:$0xff]
        %v512 = vld [vmem:[#allocation7 + $0x78] sm:$0xff]
        %v513 = vld [vmem:[%s3] sm:$0x1]
        %v515 = vlaneseq
        %v516 = vshrl.u32 %v515, 7
        %v517 = vsub.s32 0, %v516
        %v518 = vrot.slane %v513, %v517
        %520 = vmatprep.subr.mxu0 0.0
        %521 = vmatpush1.msra.mxu0 %v497
        %522 = vmatprep.subr.mxu0 0.0
        %523 = vmatpush1.msra.mxu0 %v498
        %524 = vmatprep.subr.mxu0 0.0
        %525 = vmatpush1.msra.mxu0 %v499
        %526 = vmatprep.subr.mxu0 0.0
        %527 = vmatpush1.msra.mxu0 %v500
        %528 = vmatprep.subr.mxu0 0.0
        %529 = vmatpush1.msra.mxu0 %v501
        %530 = vmatprep.subr.mxu0 0.0
        %531 = vmatpush1.msra.mxu0 %v502
        %532 = vmatprep.subr.mxu0 0.0
        %533 = vmatpush1.msra.mxu0 %v503
        %534 = vmatprep.subr.mxu0 0.0
        %535 = vmatpush1.msra.mxu0 %v504
        %536 = vmatprep.subr.mxu0 0.0
        %537 = vmatpush1.msra.mxu0 %v505
        %538 = vmatprep.subr.mxu0 0.0
        %539 = vmatpush1.msra.mxu0 %v506
        %540 = vmatprep.subr.mxu0 0.0
        %541 = vmatpush1.msra.mxu0 %v507
        %542 = vmatprep.subr.mxu0 0.0
        %543 = vmatpush1.msra.mxu0 %v508
        %544 = vmatprep.subr.mxu0 0.0
        %545 = vmatpush1.msra.mxu0 %v509
        %546 = vmatprep.subr.mxu0 0.0
        %547 = vmatpush1.msra.mxu0 %v510
        %548 = vmatprep.subr.mxu0 0.0
        %549 = vmatpush1.msra.mxu0 %v511
        %550 = vmatprep.subr.mxu0 0.0
        %551 = vmatpush1.msra.mxu0 %v512
        %552 = vmatprep.subr.mxu0 0.0
        %553 = vmatpush1.msra.mxu0 0.0
        %554 = vmatprep.subr.mxu0 0.0
        %555 = vmatpush1.msra.mxu0 0.0
        %556 = vmatprep.subr.mxu0 0.0
        %557 = vmatpush1.msra.mxu0 0.0
        %558 = vmatprep.subr.mxu0 0.0
        %559 = vmatpush1.msra.mxu0 0.0
        %560 = vmatprep.subr.mxu0 0.0
        %561 = vmatpush1.msra.mxu0 0.0
        %562 = vmatprep.subr.mxu0 0.0
        %563 = vmatpush1.msra.mxu0 0.0
        %564 = vmatprep.subr.mxu0 0.0
        %565 = vmatpush1.msra.mxu0 0.0
        %566 = vmatprep.subr.mxu0 0.0
        %567 = vmatpush1.msra.mxu0 0.0
        %568 = vmatprep.subr.mxu0 0.0
        %569 = vmatpush1.msra.mxu0 0.0
        %570 = vmatprep.subr.mxu0 0.0
        %571 = vmatpush1.msra.mxu0 0.0
        %572 = vmatprep.subr.mxu0 0.0
        %573 = vmatpush1.msra.mxu0 0.0
        %574 = vmatprep.subr.mxu0 0.0
        %575 = vmatpush1.msra.mxu0 0.0
        %576 = vmatprep.subr.mxu0 0.0
        %577 = vmatpush1.msra.mxu0 0.0
        %578 = vmatprep.subr.mxu0 0.0
        %579 = vmatpush1.msra.mxu0 0.0
        %580 = vmatprep.subr.mxu0 0.0
        %581 = vmatpush1.msra.mxu0 0.0
        %582 = vmatprep.subr.mxu0 0.0
        %583 = vmatpush1.msra.mxu0 0.0
        %584 = vmatprep.mubr.f32.mxu0 0.0
        %585 = vmatmul.mubr.f32.gmra.mrb[0].mxu0 %v496
        %v586 = vpop.f32.mrb[0].mxu0
        %v587 = vadd.f32 %v518, %v586
        %v588 = vpop.f32.mrb[0].mxu0
        %589 = vdwg.mxu0
        %v590 = vld [vmem:[%s4] sm:$0x1]
        %v591 = vld [vmem:[%s5] sm:$0x1]
        %592 = vadd.xlane.f32.xlu0 %v587
        %v593 = vpop.xlane.xlu0 %592
        %v594 = vmul.f32 %v593, 0.03125
        %v595 = vsub.f32 %v587, %v594
        %v596 = vmul.f32 %v595, %v595
        %597 = vadd.xlane.f32.xlu0 %v596
        %v598 = vpop.xlane.xlu0 %597
        %v599 = vmul.f32 %v594, %v594
        %v600 = vmul.f32 %v599, 96.0
        %v601 = vsub.f32 %v598, %v600
        %v602 = vmul.f32 %v601, 0.03125
        %v603 = vadd.f32 %v602, 1e-05
        %v604 = vrsqrt.pop %v603
        %v605 = vmul.f32 %v595, %v604
        %v607 = vlaneseq
        %v608 = vshrl.u32 %v607, 7
        %v609 = vsub.s32 0, %v608
        %v610 = vrot.slane %v590, %v609
        %v612 = vmul.f32 %v605, %v610
        %v614 = vlaneseq
        %v615 = vshrl.u32 %v614, 7
        %v616 = vsub.s32 0, %v615
        %v617 = vrot.slane %v591, %v616
        %v619 = vadd.f32 %v612, %v617
        %v620 = vmax.f32 %v619, 0.0
        %v621 = vld [vmem:[%s439] sm:$0xff]
        %v622 = vadd.f32 %v620, %v621
        %v623 = vld [vmem:[#allocation8] sm:$0xff]
        %v624 = vld [vmem:[#allocation8 + $0x8] sm:$0xff]
        %v625 = vld [vmem:[#allocation8 + $0x10] sm:$0xff]
        %v626 = vld [vmem:[#allocation8 + $0x18] sm:$0xff]
        %v627 = vld [vmem:[#allocation8 + $0x20] sm:$0xff]
        %v628 = vld [vmem:[#allocation8 + $0x28] sm:$0xff]
        %v629 = vld [vmem:[#allocation8 + $0x30] sm:$0xff]
        %v630 = vld [vmem:[#allocation8 + $0x38] sm:$0xff]
        %v631 = vld [vmem:[#allocation8 + $0x40] sm:$0xff]
        %v632 = vld [vmem:[#allocation8 + $0x48] sm:$0xff]
        %v633 = vld [vmem:[#allocation8 + $0x50] sm:$0xff]
        %v634 = vld [vmem:[#allocation8 + $0x58] sm:$0xff]
        %v635 = vld [vmem:[#allocation8 + $0x60] sm:$0xff]
        %v636 = vld [vmem:[#allocation8 + $0x68] sm:$0xff]
        %v637 = vld [vmem:[#allocation8 + $0x70] sm:$0xff]
        %v638 = vld [vmem:[#allocation8 + $0x78] sm:$0xff]
        %v639 = vld [vmem:[%s7] sm:$0x1]
        %v641 = vlaneseq
        %v642 = vshrl.u32 %v641, 7
        %v643 = vsub.s32 0, %v642
        %v644 = vrot.slane %v639, %v643
        %646 = vmatprep.subr.mxu0 0.0
        %647 = vmatpush1.msra.mxu0 %v623
        %648 = vmatprep.subr.mxu0 0.0
        %649 = vmatpush1.msra.mxu0 %v624
        %650 = vmatprep.subr.mxu0 0.0
        %651 = vmatpush1.msra.mxu0 %v625
        %652 = vmatprep.subr.mxu0 0.0
        %653 = vmatpush1.msra.mxu0 %v626
        %654 = vmatprep.subr.mxu0 0.0
        %655 = vmatpush1.msra.mxu0 %v627
        %656 = vmatprep.subr.mxu0 0.0
        %657 = vmatpush1.msra.mxu0 %v628
        %658 = vmatprep.subr.mxu0 0.0
        %659 = vmatpush1.msra.mxu0 %v629
        %660 = vmatprep.subr.mxu0 0.0
        %661 = vmatpush1.msra.mxu0 %v630
        %662 = vmatprep.subr.mxu0 0.0
        %663 = vmatpush1.msra.mxu0 %v631
        %664 = vmatprep.subr.mxu0 0.0
        %665 = vmatpush1.msra.mxu0 %v632
        %666 = vmatprep.subr.mxu0 0.0
        %667 = vmatpush1.msra.mxu0 %v633
        %668 = vmatprep.subr.mxu0 0.0
        %669 = vmatpush1.msra.mxu0 %v634
        %670 = vmatprep.subr.mxu0 0.0
        %671 = vmatpush1.msra.mxu0 %v635
        %672 = vmatprep.subr.mxu0 0.0
        %673 = vmatpush1.msra.mxu0 %v636
        %674 = vmatprep.subr.mxu0 0.0
        %675 = vmatpush1.msra.mxu0 %v637
        %676 = vmatprep.subr.mxu0 0.0
        %677 = vmatpush1.msra.mxu0 %v638
        %678 = vmatprep.subr.mxu0 0.0
        %679 = vmatpush1.msra.mxu0 0.0
        %680 = vmatprep.subr.mxu0 0.0
        %681 = vmatpush1.msra.mxu0 0.0
        %682 = vmatprep.subr.mxu0 0.0
        %683 = vmatpush1.msra.mxu0 0.0
        %684 = vmatprep.subr.mxu0 0.0
        %685 = vmatpush1.msra.mxu0 0.0
        %686 = vmatprep.subr.mxu0 0.0
        %687 = vmatpush1.msra.mxu0 0.0
        %688 = vmatprep.subr.mxu0 0.0
        %689 = vmatpush1.msra.mxu0 0.0
        %690 = vmatprep.subr.mxu0 0.0
        %691 = vmatpush1.msra.mxu0 0.0
        %692 = vmatprep.subr.mxu0 0.0
        %693 = vmatpush1.msra.mxu0 0.0
        %694 = vmatprep.subr.mxu0 0.0
        %695 = vmatpush1.msra.mxu0 0.0
        %696 = vmatprep.subr.mxu0 0.0
        %697 = vmatpush1.msra.mxu0 0.0
        %698 = vmatprep.subr.mxu0 0.0
        %699 = vmatpush1.msra.mxu0 0.0
        %700 = vmatprep.subr.mxu0 0.0
        %701 = vmatpush1.msra.mxu0 0.0
        %702 = vmatprep.subr.mxu0 0.0
        %703 = vmatpush1.msra.mxu0 0.0
        %704 = vmatprep.subr.mxu0 0.0
        %705 = vmatpush1.msra.mxu0 0.0
        %706 = vmatprep.subr.mxu0 0.0
        %707 = vmatpush1.msra.mxu0 0.0
        %708 = vmatprep.subr.mxu0 0.0
        %709 = vmatpush1.msra.mxu0 0.0
        %710 = vmatprep.mubr.f32.mxu0 0.0
        %711 = vmatmul.mubr.f32.gmra.mrb[0].mxu0 %v622
        %v712 = vpop.f32.mrb[0].mxu0
        %v713 = vadd.f32 %v644, %v712
        %v714 = vpop.f32.mrb[0].mxu0
        %715 = vdwg.mxu0
        %v716 = vld [vmem:[%s8] sm:$0x1]
        %v717 = vld [vmem:[%s9] sm:$0x1]
        %718 = vadd.xlane.f32.xlu0 %v713
        %v719 = vpop.xlane.xlu0 %718
        %v720 = vmul.f32 %v719, 0.03125
        %v721 = vsub.f32 %v713, %v720
        %v722 = vmul.f32 %v721, %v721
        %723 = vadd.xlane.f32.xlu0 %v722
        %v724 = vpop.xlane.xlu0 %723
        %v725 = vmul.f32 %v720, %v720
        %v726 = vmul.f32 %v725, 96.0
        %v727 = vsub.f32 %v724, %v726
        %v728 = vmul.f32 %v727, 0.03125
        %v729 = vadd.f32 %v728, 1e-05
        %v730 = vrsqrt.pop %v729
        %v731 = vmul.f32 %v721, %v730
        %v733 = vlaneseq
        %v734 = vshrl.u32 %v733, 7
        %v735 = vsub.s32 0, %v734
        %v736 = vrot.slane %v716, %v735
        %v738 = vmul.f32 %v731, %v736
        %v740 = vlaneseq
        %v741 = vshrl.u32 %v740, 7
        %v742 = vsub.s32 0, %v741
        %v743 = vrot.slane %v717, %v742
        %v745 = vadd.f32 %v738, %v743
        %v746 = vmax.f32 %v745, 0.0
        %v747 = vld [vmem:[%s10] sm:$0x1]
        %v749 = vlaneseq
        %v750 = vshrl.u32 %v749, 7
        %v751 = vsub.s32 0, %v750
        %v752 = vrot.slane %v747, %v751
        %v754 = vmul.f32 %v746, %v752
        %755 = vadd.xlane.f32.xlu0 %v754
        %v756 = vpop.xlane.xlu0 %755
        %s757 = sld [smem:[#allocation2]]
        %v758 = vstv %s757
        %v759 = vadd.f32 %v756, %v758
        %vm760 = vcmask 7168
        %761 = vst.msk [vmem:[%s495] sm:$0xff] %vm760, %v759
        %p762 = scmp.lt.s32.totalorder %s31, 3
        %s763 = scalar_select %p762, %s31, 3
        %s764 = smul.addr %s763, 8
        %s765 = scalar_lea.vmem %s12, %s764
        // Predicated region
        $region85: #{tpu_custom_call.1} parent=67 // pred_check
          %p766 = pneg %p311
        $region86: #{tpu_custom_call.1} parent=67 // pred_check_branch
          %768 = sbr.rel (%p766) target = $region88
        $region87: #{tpu_custom_call.1} parent=67 // pred_region
          _
        $region88: #{tpu_custom_call.1} parent=67 // pred_fallthru
          _
      $region68: #{tpu_custom_call.1} parent=5 // pred_fallthru
        _
      %p769 = scmp.le.s32.totalorder 2, %s26
      // Predicated region
      $region89: #{tpu_custom_call.1} parent=5 // pred_check
        %p770 = pneg %p769
      $region90: #{tpu_custom_call.1} parent=5 // pred_check_branch
        %772 = sbr.rel (%p770) target = $region92
      $region91: #{tpu_custom_call.1} parent=5 // pred_region
        %s773 = ssub.s32 %s26, 2
        // Predicated region
        $region93: #{tpu_custom_call.1} parent=91 // pred_check
          %p774 = pneg %p317
        $region94: #{tpu_custom_call.1} parent=91 // pred_check_branch
          %776 = sbr.rel (%p774) target = $region96
        $region95: #{tpu_custom_call.1} parent=91 // pred_region
          %p777 = scmp.lt.s32.totalorder %s32, 3
          %s778 = scalar_select %p777, %s32, 3
          %s779 = smul.addr %s778, 8
          %s780 = scalar_lea.vmem %s12, %s779
        $region96: #{tpu_custom_call.1} parent=91 // pred_fallthru
          _
      $region92: #{tpu_custom_call.1} parent=5 // pred_fallthru
        _
    $region6: #{tpu_custom_call.1} parent=1 // loop_footer
      %s30 = sadd.s32 1, %s26
    $region7: #{tpu_custom_call.1} parent=1 // loop_footer_branch
      %25 = sbr.rel target = $region3
    $region8: #{tpu_custom_call.1} parent=1 // loop_exit
      _
    %781 = vsyncpa [#allocation4], 1
    %s782 = scalar_lea.sflag [#allocation4], 1
    %783 = vsyncpa %s782, 1
    %784 = vsyncpa [#allocation6], 1
    %s785 = scalar_lea.sflag [#allocation6], 1
    %786 = vsyncpa %s785, 1
    %787 = vsyncpa [#allocation9], 1

</llo_original>
